<compile_context>
chip_gen: v6e
topology: v6e:2x2x1
jax: 0.10.0
libtpu: 0.0.40
codegen_flags: <defaults>
</compile_context>

<pallas_src>
import functools

import jax
import jax.numpy as jnp
from jax import lax
from jax.experimental import pallas as pl
from jax.experimental.pallas import tpu as pltpu

NORM_P = 2.0
EPS = 1e-5
PI = 3.141592653589793


def _ellipsis_kernel(norm_p, eps, s1_ref, s2t_ref, dist_ref, out_ref):
    """One grid step = one (set, P-tile, O-tile) block.

    s1_ref  : (TP, 5)   rows [x, y, short_diam, long_diam, theta]
    s2t_ref : (5, TO)   transposed -> each feature is a lane-contiguous row
    dist_ref / out_ref : (TP, TO)
    """
    s1 = s1_ref[...]
    s2 = s2t_ref[...]

    # ---- per-point quantities, (TP, 1) --------------------------------------
    x1 = s1[:, 0:1]
    y1 = s1[:, 1:2]
    r_short_1 = s1[:, 2:3] * 0.5
    r_long_1 = s1[:, 3:4] * 0.5
    theta1 = s1[:, 4:5]

    # ---- per-other quantities, (1, TO) --------------------------------------
    x2 = s2[0:1, :]
    y2 = s2[1:2, :]
    r_short_2 = s2[2:3, :] * 0.5
    r_long_2 = s2[3:4, :] * 0.5
    theta2 = s2[4:5, :]

    # ---- pairwise direction vectors, (TP, TO) --------------------------------
    dx = x2 - x1
    dy = y2 - y1
    # Reference bumps coincident pairs by +128 on both axes (-> alpha = pi/4).
    coincident = jnp.logical_and(dx == 0.0, dy == 0.0)
    bump = coincident.astype(dx.dtype) * 128.0
    dx = dx + bump
    dy = dy + bump
    # NOTE: the reference's `* any(vectors != 0)` mask is always 1.0 after the
    # bump, so it is dropped here (dead code).

    if norm_p == 2.0:
        # Per-tile trig only on the skinny axes (TP + TO elements, <1% of the
        # (TP, TO) tile work).
        cos_t1 = jnp.cos(theta1)
        sin_t1 = jnp.sin(theta1)
        rl1_sq = r_long_1 * r_long_1
        rs1_sq = r_short_1 * r_short_1
        num_1 = r_long_1 * r_short_1            # numerator for radius_2

        cos_t2 = jnp.cos(theta2)
        sin_t2 = jnp.sin(theta2)
        rl2_sq = r_long_2 * r_long_2
        rs2_sq = r_short_2 * r_short_2
        num_2 = r_long_2 * r_short_2            # numerator for radius_1

        rinv = lax.rsqrt(dx * dx + dy * dy)      # strictly > 0 after the bump
        cos_a = dx * rinv                        # cos(alpha)
        sin_a = dy * rinv                        # sin(alpha)

        # cos/sin(theta - alpha); the extra -pi in pointing_2 only flips the
        # sign, which is irrelevant once squared (norm_p == 2).
        cos_p1 = cos_t2 * cos_a + sin_t2 * sin_a   # cos(theta2 - alpha)
        sin_p1 = sin_t2 * cos_a - cos_t2 * sin_a   # sin(theta2 - alpha)
        cos_p2 = cos_t1 * cos_a + sin_t1 * sin_a   # cos(theta1 - alpha)
        sin_p2 = sin_t1 * cos_a - cos_t1 * sin_a   # sin(theta1 - alpha)

        den_1 = jnp.sqrt(cos_p1 * cos_p1 * rl2_sq + sin_p1 * sin_p1 * rs2_sq) + eps
        den_2 = jnp.sqrt(cos_p2 * cos_p2 * rl1_sq + sin_p2 * sin_p2 * rs1_sq) + eps

        radius_1 = num_2 * pl.reciprocal(den_1, approx=True)
        radius_2 = num_1 * pl.reciprocal(den_2, approx=True)
    else:
        # Faithful general-norm fallback (matches the torch reference verbatim;
        # like the reference, only well-defined for even norm_p).
        alpha = jnp.arctan2(dy, dx)
        pointing_1 = theta2 - alpha
        pointing_2 = theta1 - (alpha + PI)
        inv_p = 1.0 / norm_p
        den_1 = jnp.power(
            jnp.power(jnp.cos(pointing_1) * r_long_2, norm_p)
            + jnp.power(jnp.abs(jnp.sin(pointing_1)) * r_short_2, norm_p),
            inv_p) + eps
        den_2 = jnp.power(
            jnp.power(jnp.cos(pointing_2) * r_long_1, norm_p)
            + jnp.power(jnp.sin(pointing_2) * r_short_1, norm_p),
            inv_p) + eps
        radius_1 = (r_long_2 * r_short_2) / den_1
        radius_2 = (r_long_1 * r_short_1) / den_2

    radius_1 = jnp.maximum(radius_1, eps)   # == clip(x, eps, inf)
    radius_2 = jnp.maximum(radius_2, eps)

    out_ref[...] = dist_ref[...] - radius_1 - radius_2


def _pick_tile(dim, candidates):
    """Largest candidate tile that divides `dim`; full extent otherwise."""
    for c in candidates:
        if c <= dim and dim % c == 0:
            return c
    return dim  # full-extent block is always a legal block shape


# Per-(TP, TO) f32 block budget: 2 MiB -> double-buffered dist + out ~= 8 MiB.
_BLOCK_BYTES = 2 * 1024 * 1024


def ellipsis_overlap(state_1, state_2, distance_matrix,
                     norm_p: float = NORM_P, eps: float = EPS):
    S, P, F = state_1.shape
    S2, O, F2 = state_2.shape
    assert S == S2 and F == F2 and F >= 5
    assert distance_matrix.shape == (S, P, O)

    # Wrapper-side layout plumbing: drop unused feature columns and put the
    # "others" features on the lane axis so the kernel reads contiguous rows.
    s1 = state_1[..., :5]                          # (S, P, 5)
    s2t = jnp.swapaxes(state_2[..., :5], 1, 2)     # (S, 5, O)

    # Lane-dense (multiple-of-128) O tiles first, then the biggest P tile that
    # keeps a single (TP, TO) f32 block under the VMEM budget.
    TO = _pick_tile(O, (2048, 1024, 512, 256, 128))
    max_tp = max(8, (_BLOCK_BYTES // 4) // max(TO, 1))
    tp_cands = tuple(c for c in (512, 256, 128, 64, 32, 16, 8) if c <= max_tp)
    TP = _pick_tile(P, tp_cands)

    kernel = functools.partial(_ellipsis_kernel, float(norm_p), float(eps))
    return pl.pallas_call(
        kernel,
        out_shape=jax.ShapeDtypeStruct((S, P, O), distance_matrix.dtype),
        grid=(S, P // TP, O // TO),
        in_specs=[
            pl.BlockSpec((None, TP, 5), lambda s, i, j: (s, i, 0)),
            pl.BlockSpec((None, 5, TO), lambda s, i, j: (s, 0, j)),
            pl.BlockSpec((None, TP, TO), lambda s, i, j: (s, i, j)),
        ],
        out_specs=pl.BlockSpec((None, TP, TO), lambda s, i, j: (s, i, j)),
        # Output overwrites distance_matrix elementwise -> alias the buffers.
        input_output_aliases={2: 0},
        compiler_params=pltpu.CompilerParams(
            dimension_semantics=("parallel", "parallel", "parallel"),
            vmem_limit_bytes=32 * 1024 * 1024),
    )(s1, s2t, distance_matrix)


def ellipsis_overlap_ref(state_1, state_2, distance_matrix,
                         norm_p: float = NORM_P, eps: float = EPS):
    """Pure-JAX transcription of the torch reference, for verification."""
    S, P, _ = state_1.shape
    O = state_2.shape[1]
    rs = (state_1[:, :, 2] / 2).reshape(S, P, 1)
    rl = (state_1[:, :, 3] / 2).reshape(S, P, 1)
    pos = state_1[:, :, :2]
    rs_o = (state_2[:, :, 2] / 2).reshape(S, 1, O)
    rl_o = (state_2[:, :, 3] / 2).reshape(S, 1, O)
    pos_o = state_2[:, :, :2]
    vectors = pos_o.reshape(S, 1, O, 2) - pos.reshape(S, P, 1, 2)
    vectors = vectors + jnp.all(vectors == 0, axis=-1).reshape(S, P, O, 1) * 128
    alpha = jnp.arctan2(vectors[..., 1], vectors[..., 0]) * jnp.any(
        vectors != 0, axis=-1)
    pointing_1 = state_2[:, :, 4].reshape(S, 1, O) - alpha
    pointing_2 = state_1[:, :, 4].reshape(S, P, 1) - (alpha + PI)
    radius_1 = rl_o * rs_o / (jnp.power(
        jnp.power(jnp.cos(pointing_1) * rl_o, norm_p)
        + jnp.power(jnp.abs(jnp.sin(pointing_1)) * rs_o, norm_p),
        1 / norm_p) + eps)
    radius_2 = rl * rs / (jnp.power(
        jnp.power(jnp.cos(pointing_2) * rl, norm_p)
        + jnp.power(jnp.sin(pointing_2) * rs, norm_p),
        1 / norm_p) + eps)
    radius_1 = jnp.clip(radius_1, eps, jnp.inf)
    radius_2 = jnp.clip(radius_2, eps, jnp.inf)
    return distance_matrix - radius_1 - radius_2


if __name__ == "__main__":
    def make_inputs(key, S, P, O):
        k1, k2, k3, k4, k5, k6 = jax.random.split(key, 6)
        # state_1: [x, y, short_diameter, long_diameter, orientation]
        pos1 = jax.random.uniform(k1, (S, P, 2), jnp.float32, 0.0, 10.0)
        rad1 = jax.random.uniform(k2, (S, P, 2), jnp.float32, 0.5, 2.0)
        ang1 = jax.random.uniform(k3, (S, P, 1), jnp.float32, 0.0, 2.0 * PI)
        state_1 = jnp.concatenate([pos1, rad1, ang1], axis=-1)
        pos2 = jax.random.uniform(k4, (S, O, 2), jnp.float32, 0.0, 10.0)
        rad2 = jax.random.uniform(k5, (S, O, 2), jnp.float32, 0.5, 2.0)
        ang2 = jax.random.uniform(k6, (S, O, 1), jnp.float32, 0.0, 2.0 * PI)
        state_2 = jnp.concatenate([pos2, rad2, ang2], axis=-1)
        # make some "others" coincide with state_1 positions to exercise the
        # zero-vector (+128) branch
        n = min(P, O)
        state_2 = state_2.at[:, :n, :2].set(state_1[:, :n, :2])
        diff = state_2[:, None, :, :2] - state_1[:, :, None, :2]
        dist = jnp.sqrt(jnp.sum(diff * diff, axis=-1))   # (S, P, O)
        return state_1, state_2, dist

    key = jax.random.PRNGKey(0)
    k_small, k_tiled, k_gen = jax.random.split(key, 3)

    cases = (("small_p2", (2, 8, 16), k_small, 2.0),
             ("tiled_p2", (1, 16, 384), k_tiled, 2.0),   # lane-dense O tiles
             ("small_p4", (2, 8, 16), k_gen, 4.0))        # general-norm path

    all_ok = True
    for name, (S, P, O), k, p in cases:
        state_1, state_2, dist = make_inputs(k, S, P, O)
        # Reference computed BEFORE the kernel: the kernel aliases (donates)
        # distance_matrix's buffer into its output.
        ref = jax.block_until_ready(
            ellipsis_overlap_ref(state_1, state_2, dist, norm_p=p))
        out = jax.block_until_ready(
            ellipsis_overlap(state_1, state_2, dist, norm_p=p))
        assert out.shape == (S, P, O) and out.dtype == jnp.float32
        # atol covers the approximate EUP reciprocal (few*1e-4 abs on radii).
        if not jnp.allclose(out, ref, rtol=1e-3, atol=1e-2):
            all_ok = False
            print(f"mismatch on {name}: max abs err = "
                  f"{float(jnp.max(jnp.abs(out - ref)))}")
    assert all_ok, "mismatch vs reference"
    print("KERNEL_OK")
</pallas_src>

<mosaic_0001>
module attributes {stable_mosaic.version = 11 : i64} {
  func.func @_ellipsis_kernel(%arg0: i32, %arg1: i32, %arg2: i32, %arg3: memref<1x8x5xf32, #tpu.memory_space<vmem>>, %arg4: memref<1x5x16xf32, #tpu.memory_space<vmem>>, %arg5: memref<1x8x16xf32, #tpu.memory_space<vmem>>, %arg6: memref<1x8x16xf32, #tpu.memory_space<vmem>>) attributes {dimension_semantics = [#tpu.dimension_semantics<parallel>, #tpu.dimension_semantics<parallel>, #tpu.dimension_semantics<parallel>], iteration_bounds = array<i64: 2, 1, 1>, scalar_prefetch = 0 : i64, scratch_operands = 0 : i64, tpu.core_type = #tpu.core_type<tc>, window_params = [{transform_indices = @transform_0, window_bounds = array<i64: 1, 8, 5>}, {transform_indices = @transform_1, window_bounds = array<i64: 1, 5, 16>}, {transform_indices = @transform_2, window_bounds = array<i64: 1, 8, 16>}, {transform_indices = @transform_3, window_bounds = array<i64: 1, 8, 16>}]} {
    %c0 = arith.constant 0 : index
    %c0_0 = arith.constant 0 : index
    %c0_1 = arith.constant 0 : index
    %0 = vector.load %arg3[%c0, %c0_0, %c0_1] : memref<1x8x5xf32, #tpu.memory_space<vmem>>, vector<1x8x5xf32>
    %1 = vector.shape_cast %0 : vector<1x8x5xf32> to vector<8x5xf32>
    %c0_2 = arith.constant 0 : index
    %c0_3 = arith.constant 0 : index
    %c0_4 = arith.constant 0 : index
    %2 = vector.load %arg4[%c0_2, %c0_3, %c0_4] : memref<1x5x16xf32, #tpu.memory_space<vmem>>, vector<1x5x16xf32>
    %3 = vector.shape_cast %2 : vector<1x5x16xf32> to vector<5x16xf32>
    %4 = vector.extract_strided_slice %1 {offsets = [0, 0], sizes = [8, 1], strides = [1, 1]} : vector<8x5xf32> to vector<8x1xf32>
    %5 = vector.extract_strided_slice %1 {offsets = [0, 1], sizes = [8, 1], strides = [1, 1]} : vector<8x5xf32> to vector<8x1xf32>
    %6 = vector.extract_strided_slice %1 {offsets = [0, 2], sizes = [8, 1], strides = [1, 1]} : vector<8x5xf32> to vector<8x1xf32>
    %cst = arith.constant 5.000000e-01 : f32
    %7 = vector.broadcast %cst : f32 to vector<8x1xf32>
    %8 = arith.mulf %6, %7 : vector<8x1xf32>
    %9 = vector.extract_strided_slice %1 {offsets = [0, 3], sizes = [8, 1], strides = [1, 1]} : vector<8x5xf32> to vector<8x1xf32>
    %cst_5 = arith.constant 5.000000e-01 : f32
    %10 = vector.broadcast %cst_5 : f32 to vector<8x1xf32>
    %11 = arith.mulf %9, %10 : vector<8x1xf32>
    %12 = vector.extract_strided_slice %1 {offsets = [0, 4], sizes = [8, 1], strides = [1, 1]} : vector<8x5xf32> to vector<8x1xf32>
    %13 = vector.extract_strided_slice %3 {offsets = [0, 0], sizes = [1, 16], strides = [1, 1]} : vector<5x16xf32> to vector<1x16xf32>
    %14 = vector.extract_strided_slice %3 {offsets = [1, 0], sizes = [1, 16], strides = [1, 1]} : vector<5x16xf32> to vector<1x16xf32>
    %15 = vector.extract_strided_slice %3 {offsets = [2, 0], sizes = [1, 16], strides = [1, 1]} : vector<5x16xf32> to vector<1x16xf32>
    %cst_6 = arith.constant 5.000000e-01 : f32
    %16 = vector.broadcast %cst_6 : f32 to vector<1x16xf32>
    %17 = arith.mulf %15, %16 : vector<1x16xf32>
    %18 = vector.extract_strided_slice %3 {offsets = [3, 0], sizes = [1, 16], strides = [1, 1]} : vector<5x16xf32> to vector<1x16xf32>
    %cst_7 = arith.constant 5.000000e-01 : f32
    %19 = vector.broadcast %cst_7 : f32 to vector<1x16xf32>
    %20 = arith.mulf %18, %19 : vector<1x16xf32>
    %21 = vector.extract_strided_slice %3 {offsets = [4, 0], sizes = [1, 16], strides = [1, 1]} : vector<5x16xf32> to vector<1x16xf32>
    %22 = vector.broadcast %13 : vector<1x16xf32> to vector<8x16xf32>
    %23 = vector.broadcast %4 : vector<8x1xf32> to vector<8x16xf32>
    %24 = arith.subf %22, %23 : vector<8x16xf32>
    %25 = vector.broadcast %14 : vector<1x16xf32> to vector<8x16xf32>
    %26 = vector.broadcast %5 : vector<8x1xf32> to vector<8x16xf32>
    %27 = arith.subf %25, %26 : vector<8x16xf32>
    %cst_8 = arith.constant 0.000000e+00 : f32
    %28 = vector.broadcast %cst_8 : f32 to vector<8x16xf32>
    %29 = arith.cmpf oeq, %24, %28 : vector<8x16xf32>
    %cst_9 = arith.constant 0.000000e+00 : f32
    %30 = vector.broadcast %cst_9 : f32 to vector<8x16xf32>
    %31 = arith.cmpf oeq, %27, %30 : vector<8x16xf32>
    %32 = arith.andi %29, %31 : vector<8x16xi1>
    %33 = arith.extui %32 : vector<8x16xi1> to vector<8x16xi32>
    %34 = arith.sitofp %33 : vector<8x16xi32> to vector<8x16xf32>
    %cst_10 = arith.constant 1.280000e+02 : f32
    %35 = vector.broadcast %cst_10 : f32 to vector<8x16xf32>
    %36 = arith.mulf %34, %35 : vector<8x16xf32>
    %37 = arith.addf %24, %36 : vector<8x16xf32>
    %38 = arith.addf %27, %36 : vector<8x16xf32>
    %39 = math.cos %12 : vector<8x1xf32>
    %40 = math.sin %12 : vector<8x1xf32>
    %41 = arith.mulf %11, %11 : vector<8x1xf32>
    %42 = arith.mulf %8, %8 : vector<8x1xf32>
    %43 = arith.mulf %11, %8 : vector<8x1xf32>
    %44 = math.cos %21 : vector<1x16xf32>
    %45 = math.sin %21 : vector<1x16xf32>
    %46 = arith.mulf %20, %20 : vector<1x16xf32>
    %47 = arith.mulf %17, %17 : vector<1x16xf32>
    %48 = arith.mulf %20, %17 : vector<1x16xf32>
    %49 = arith.mulf %37, %37 : vector<8x16xf32>
    %50 = arith.mulf %38, %38 : vector<8x16xf32>
    %51 = arith.addf %49, %50 : vector<8x16xf32>
    %52 = math.rsqrt %51 : vector<8x16xf32>
    %53 = arith.mulf %37, %52 : vector<8x16xf32>
    %54 = arith.mulf %38, %52 : vector<8x16xf32>
    %55 = vector.broadcast %44 : vector<1x16xf32> to vector<8x16xf32>
    %56 = arith.mulf %55, %53 : vector<8x16xf32>
    %57 = vector.broadcast %45 : vector<1x16xf32> to vector<8x16xf32>
    %58 = arith.mulf %57, %54 : vector<8x16xf32>
    %59 = arith.addf %56, %58 : vector<8x16xf32>
    %60 = vector.broadcast %45 : vector<1x16xf32> to vector<8x16xf32>
    %61 = arith.mulf %60, %53 : vector<8x16xf32>
    %62 = vector.broadcast %44 : vector<1x16xf32> to vector<8x16xf32>
    %63 = arith.mulf %62, %54 : vector<8x16xf32>
    %64 = arith.subf %61, %63 : vector<8x16xf32>
    %65 = vector.broadcast %39 : vector<8x1xf32> to vector<8x16xf32>
    %66 = arith.mulf %65, %53 : vector<8x16xf32>
    %67 = vector.broadcast %40 : vector<8x1xf32> to vector<8x16xf32>
    %68 = arith.mulf %67, %54 : vector<8x16xf32>
    %69 = arith.addf %66, %68 : vector<8x16xf32>
    %70 = vector.broadcast %40 : vector<8x1xf32> to vector<8x16xf32>
    %71 = arith.mulf %70, %53 : vector<8x16xf32>
    %72 = vector.broadcast %39 : vector<8x1xf32> to vector<8x16xf32>
    %73 = arith.mulf %72, %54 : vector<8x16xf32>
    %74 = arith.subf %71, %73 : vector<8x16xf32>
    %75 = arith.mulf %59, %59 : vector<8x16xf32>
    %76 = vector.broadcast %46 : vector<1x16xf32> to vector<8x16xf32>
    %77 = arith.mulf %75, %76 : vector<8x16xf32>
    %78 = arith.mulf %64, %64 : vector<8x16xf32>
    %79 = vector.broadcast %47 : vector<1x16xf32> to vector<8x16xf32>
    %80 = arith.mulf %78, %79 : vector<8x16xf32>
    %81 = arith.addf %77, %80 : vector<8x16xf32>
    %82 = math.sqrt %81 : vector<8x16xf32>
    %cst_11 = arith.constant 9.99999974E-6 : f32
    %83 = vector.broadcast %cst_11 : f32 to vector<8x16xf32>
    %84 = arith.addf %82, %83 : vector<8x16xf32>
    %85 = arith.mulf %69, %69 : vector<8x16xf32>
    %86 = vector.broadcast %41 : vector<8x1xf32> to vector<8x16xf32>
    %87 = arith.mulf %85, %86 : vector<8x16xf32>
    %88 = arith.mulf %74, %74 : vector<8x16xf32>
    %89 = vector.broadcast %42 : vector<8x1xf32> to vector<8x16xf32>
    %90 = arith.mulf %88, %89 : vector<8x16xf32>
    %91 = arith.addf %87, %90 : vector<8x16xf32>
    %92 = math.sqrt %91 : vector<8x16xf32>
    %cst_12 = arith.constant 9.99999974E-6 : f32
    %93 = vector.broadcast %cst_12 : f32 to vector<8x16xf32>
    %94 = arith.addf %92, %93 : vector<8x16xf32>
    %95 = tpu.reciprocal %84 {approx = true} : vector<8x16xf32> -> vector<8x16xf32>
    %96 = vector.broadcast %48 : vector<1x16xf32> to vector<8x16xf32>
    %97 = arith.mulf %96, %95 : vector<8x16xf32>
    %98 = tpu.reciprocal %94 {approx = true} : vector<8x16xf32> -> vector<8x16xf32>
    %99 = vector.broadcast %43 : vector<8x1xf32> to vector<8x16xf32>
    %100 = arith.mulf %99, %98 : vector<8x16xf32>
    %cst_13 = arith.constant 9.99999974E-6 : f32
    %101 = vector.broadcast %cst_13 : f32 to vector<8x16xf32>
    %102 = arith.maximumf %97, %101 : vector<8x16xf32>
    %cst_14 = arith.constant 9.99999974E-6 : f32
    %103 = vector.broadcast %cst_14 : f32 to vector<8x16xf32>
    %104 = arith.maximumf %100, %103 : vector<8x16xf32>
    %c0_15 = arith.constant 0 : index
    %c0_16 = arith.constant 0 : index
    %c0_17 = arith.constant 0 : index
    %105 = vector.load %arg5[%c0_15, %c0_16, %c0_17] : memref<1x8x16xf32, #tpu.memory_space<vmem>>, vector<1x8x16xf32>
    %106 = vector.shape_cast %105 : vector<1x8x16xf32> to vector<8x16xf32>
    %107 = arith.subf %106, %102 : vector<8x16xf32>
    %108 = arith.subf %107, %104 : vector<8x16xf32>
    %c0_18 = arith.constant 0 : index
    %c0_19 = arith.constant 0 : index
    %c0_20 = arith.constant 0 : index
    %109 = vector.load %arg6[%c0_18, %c0_19, %c0_20] : memref<1x8x16xf32, #tpu.memory_space<vmem>>, vector<1x8x16xf32>
    %110 = vector.shape_cast %109 : vector<1x8x16xf32> to vector<8x16xf32>
    %111 = vector.shape_cast %108 : vector<8x16xf32> to vector<1x8x16xf32>
    tpu.vector_store %arg6[%c0_18, %c0_19, %c0_20], %111 {strides = array<i32>} : memref<1x8x16xf32, #tpu.memory_space<vmem>>, vector<1x8x16xf32>,
    return
  }
  func.func @transform_0(%arg0: i32, %arg1: i32, %arg2: i32) -> (i32, i32, i32) {
    %c0_i32 = arith.constant 0 : i32
    %c0_i32_0 = arith.constant 0 : i32
    return %arg0, %arg1, %c0_i32 : i32, i32, i32
  }
  func.func @transform_1(%arg0: i32, %arg1: i32, %arg2: i32) -> (i32, i32, i32) {
    %c0_i32 = arith.constant 0 : i32
    %c0_i32_0 = arith.constant 0 : i32
    return %arg0, %c0_i32, %arg2 : i32, i32, i32
  }
  func.func @transform_2(%arg0: i32, %arg1: i32, %arg2: i32) -> (i32, i32, i32) {
    %c0_i32 = arith.constant 0 : i32
    return %arg0, %arg1, %arg2 : i32, i32, i32
  }
  func.func @transform_3(%arg0: i32, %arg1: i32, %arg2: i32) -> (i32, i32, i32) {
    %c0_i32 = arith.constant 0 : i32
    return %arg0, %arg1, %arg2 : i32, i32, i32
  }
}

</mosaic_0001>

<llo_original>
// kernel: tpu_custom_call.1
$region0: #{tpu_custom_call.1}
  #allocation0 [shape = 'u32[]', space=smem, size = 0x4, offset = 0x4, fixed_abs, tag = 'smem constant byte address 0x4 - core index']
  #allocation1 [shape = 'u32[144,128]{1,0:T(1,128)}', space=vmem, size = 0x12000, scoped, tag = 'internal scratch']
  %s0 = inlined_call_operand.vmem [shape: f32[2,8,5], index: 0, kind: input, shape index: {}]
  %s1 = inlined_call_operand.vmem [shape: f32[2,5,16], index: 1, kind: input, shape index: {}]
  %s2 = inlined_call_operand.hbm [shape: f32[2,8,16], index: 2, kind: input, shape index: {}, may-alias: {2,3}]
  %s3 = inlined_call_operand.hbm [shape: f32[2,8,16], index: 3, kind: output, shape index: {}, may-alias: {2,3}]
  %s4 = sld [smem:[#allocation0]]
  $region49: #{tpu_custom_call.1} parent=0
    _
  %s6 = ssub.s32 1, %s4
  %s7 = scalar_select 0, %s6, %s4
  $region1: #{tpu_custom_call.1} parent=0
    #allocation2 [shape = 'u8[8192]{0}', space=vmem, size = 0x2000, scoped, tag = 'input window, operand 2']
    #allocation3 [shape = 's32[2]{0}', space=sflag, size = 0x8, scoped, tag = 'scoped memory for tpu_custom_call.1']
    #allocation4 [shape = 's32[2]{0}', space=sflag, size = 0x8, scoped, tag = 'scoped memory for tpu_custom_call.1']
    #allocation5 [shape = 'u8[8192]{0}', space=vmem, size = 0x2000, scoped, tag = 'output window, operand 0']
    %8 = vsyncpa [#allocation3], 0
    %s9 = scalar_lea.sflag [#allocation3], 1
    %10 = vsyncpa %s9, 0
    %11 = vsyncpa [#allocation4], 0
    %s12 = scalar_lea.sflag [#allocation4], 1
    %13 = vsyncpa %s12, 0
    loop: start=0, step=1, limit=4
    $region2: #{tpu_custom_call.1} parent=1 // loop_pre_header
      _
    $region3: #{tpu_custom_call.1} parent=1 // loop_header
      %s15 = sphi 0, %s19
      %p16 = scmp.ge.s32.totalorder %s15, 4
      %s22 = sphi 0, %s41
      %s23 = sphi 0, %s37
      %s24 = sphi 0, %s33
      %s25 = sphi 0, %s22
      %s26 = sphi 0, %s23
      %s27 = sphi 0, %s24
      %s28 = sphi 0, %s25
      %s29 = sphi 0, %s26
      %s30 = sphi 0, %s27
      %s46 = sphi 0, %s48
      %s49 = sphi 0, %s46
      %s50 = sphi 0, %s49
      %s66 = sphi 0, %s50
      %s74 = sphi 0, %s76
      %s77 = sphi 0, %s74
      %s78 = sphi 0, %s77
      %s94 = sphi 0, %s78
      %s104 = sphi 0, %s106
      %s107 = sphi 0, %s104
      %s108 = sphi 0, %s107
      %s124 = sphi 0, %s108
      %s134 = sphi 0, %s136
      %s137 = sphi 0, %s134
      %s138 = sphi 0, %s137
      %s154 = sphi 0, %s138
    $region4: #{tpu_custom_call.1} parent=1 // loop_header_branch
      %18 = sbr.rel (%p16) target = $region8
    $region5: #{tpu_custom_call.1} parent=1 // loop_body
      %s20 = ssub.s32 %s15, 1
      %s21 = ssub.s32 %s15, 2
      %s31 = sadd.s32 1, %s24
      %p32 = scmp.ge.s32.totalorder %s31, 1
      %s33 = scalar_select %p32, 0, %s31
      %s34 = sadd.s32 1, %s23
      %s35 = scalar_select %p32, %s34, %s23
      %p36 = scmp.ge.s32.totalorder %s35, 1
      %s37 = scalar_select %p36, 0, %s35
      %s38 = sadd.s32 1, %s22
      %s39 = scalar_select %p36, %s38, %s22
      %p40 = scmp.ge.s32.totalorder %s39, 2
      %s41 = scalar_select %p40, 0, %s39
      %s42 = ssub.s32 %s22, %s41
      %s43 = ssub.s32 %s23, %s37
      %s44 = sor.u32 %s42, %s43
      %p45 = scmp.eq.s32.totalorder %s44, 0
      %s47 = sadd.s32 %s46, 1
      %s48 = scalar_select %p45, %s46, %s47
      %p51 = pneg %p45
      %p52 = scmp.eq.s32.totalorder %s15, 1
      %p53 = por %p51, %p52
      %p54 = scmp.ne.s32.totalorder %s46, %s49
      %p55 = scmp.eq.s32.totalorder %s15, 0
      %p56 = por %p54, %p55
      %p57 = scmp.ne.s32.totalorder %s46, %s49
      %p58 = scmp.eq.s32.totalorder %s20, 1
      %p59 = por %p57, %p58
      %p60 = scmp.ne.s32.totalorder %s49, %s50
      %p61 = scmp.eq.s32.totalorder %s20, 0
      %p62 = por %p60, %p61
      %p63 = scmp.ne.s32.totalorder %s49, %s50
      %p64 = scmp.eq.s32.totalorder %s21, 1
      %p65 = por %p63, %p64
      %p67 = scmp.ne.s32.totalorder %s50, %s66
      %p68 = scmp.eq.s32.totalorder %s21, 0
      %p69 = por %p67, %p68
      %s70 = ssub.s32 %s22, %s41
      %s71 = ssub.s32 %s24, %s33
      %s72 = sor.u32 %s70, %s71
      %p73 = scmp.eq.s32.totalorder %s72, 0
      %s75 = sadd.s32 %s74, 1
      %s76 = scalar_select %p73, %s74, %s75
      %p79 = pneg %p73
      %p80 = scmp.eq.s32.totalorder %s15, 1
      %p81 = por %p79, %p80
      %p82 = scmp.ne.s32.totalorder %s74, %s77
      %p83 = scmp.eq.s32.totalorder %s15, 0
      %p84 = por %p82, %p83
      %p85 = scmp.ne.s32.totalorder %s74, %s77
      %p86 = scmp.eq.s32.totalorder %s20, 1
      %p87 = por %p85, %p86
      %p88 = scmp.ne.s32.totalorder %s77, %s78
      %p89 = scmp.eq.s32.totalorder %s20, 0
      %p90 = por %p88, %p89
      %p91 = scmp.ne.s32.totalorder %s77, %s78
      %p92 = scmp.eq.s32.totalorder %s21, 1
      %p93 = por %p91, %p92
      %p95 = scmp.ne.s32.totalorder %s78, %s94
      %p96 = scmp.eq.s32.totalorder %s21, 0
      %p97 = por %p95, %p96
      %s98 = ssub.s32 %s22, %s41
      %s99 = ssub.s32 %s23, %s37
      %s100 = sor.u32 %s98, %s99
      %s101 = ssub.s32 %s24, %s33
      %s102 = sor.u32 %s100, %s101
      %p103 = scmp.eq.s32.totalorder %s102, 0
      %s105 = sadd.s32 %s104, 1
      %s106 = scalar_select %p103, %s104, %s105
      %p109 = pneg %p103
      %p110 = scmp.eq.s32.totalorder %s15, 1
      %p111 = por %p109, %p110
      %p112 = scmp.ne.s32.totalorder %s104, %s107
      %p113 = scmp.eq.s32.totalorder %s15, 0
      %p114 = por %p112, %p113
      %p115 = scmp.ne.s32.totalorder %s104, %s107
      %p116 = scmp.eq.s32.totalorder %s20, 1
      %p117 = por %p115, %p116
      %p118 = scmp.ne.s32.totalorder %s107, %s108
      %p119 = scmp.eq.s32.totalorder %s20, 0
      %p120 = por %p118, %p119
      %p121 = scmp.ne.s32.totalorder %s107, %s108
      %p122 = scmp.eq.s32.totalorder %s21, 1
      %p123 = por %p121, %p122
      %p125 = scmp.ne.s32.totalorder %s108, %s124
      %p126 = scmp.eq.s32.totalorder %s21, 0
      %p127 = por %p125, %p126
      %s128 = ssub.s32 %s22, %s41
      %s129 = ssub.s32 %s23, %s37
      %s130 = sor.u32 %s128, %s129
      %s131 = ssub.s32 %s24, %s33
      %s132 = sor.u32 %s130, %s131
      %p133 = scmp.eq.s32.totalorder %s132, 0
      %s135 = sadd.s32 %s134, 1
      %s136 = scalar_select %p133, %s134, %s135
      %p139 = pneg %p133
      %p140 = scmp.eq.s32.totalorder %s15, 1
      %p141 = por %p139, %p140
      %p142 = scmp.ne.s32.totalorder %s134, %s137
      %p143 = scmp.eq.s32.totalorder %s15, 0
      %p144 = por %p142, %p143
      %p145 = scmp.ne.s32.totalorder %s134, %s137
      %p146 = scmp.eq.s32.totalorder %s20, 1
      %p147 = por %p145, %p146
      %p148 = scmp.ne.s32.totalorder %s137, %s138
      %p149 = scmp.eq.s32.totalorder %s20, 0
      %p150 = por %p148, %p149
      %p151 = scmp.ne.s32.totalorder %s137, %s138
      %p152 = scmp.eq.s32.totalorder %s21, 1
      %p153 = por %p151, %p152
      %p155 = scmp.ne.s32.totalorder %s138, %s154
      %p156 = scmp.eq.s32.totalorder %s21, 0
      %p157 = por %p155, %p156
      %p158 = scmp.le.s32.totalorder 1, %s15
      %p159 = scmp.lt.s32.totalorder %s15, 3
      %p160 = pnand %p158, %p159
      %p161 = pneg %p160
      // Predicated region
      $region9: #{tpu_custom_call.1} parent=5 // pred_check
        _
      $region10: #{tpu_custom_call.1} parent=5 // pred_check_branch
        %163 = sbr.rel (%p160) target = $region12
      $region11: #{tpu_custom_call.1} parent=5 // pred_region
        %s164 = ssub.s32 %s15, 1
      $region12: #{tpu_custom_call.1} parent=5 // pred_fallthru
        _
      %p165 = scmp.lt.s32.totalorder %s15, 2
      // Predicated region
      $region13: #{tpu_custom_call.1} parent=5 // pred_check
        %p166 = pneg %p165
      $region14: #{tpu_custom_call.1} parent=5 // pred_check_branch
        %168 = sbr.rel (%p166) target = $region16
      $region15: #{tpu_custom_call.1} parent=5 // pred_region
        // Predicated region
        $region17: #{tpu_custom_call.1} parent=15 // pred_check
          %p169 = pneg %p56
        $region18: #{tpu_custom_call.1} parent=15 // pred_check_branch
          %171 = sbr.rel (%p169) target = $region20
        $region19: #{tpu_custom_call.1} parent=15 // pred_region
          %p172 = scmp.lt.s32.totalorder %s22, 1
          %s173 = scalar_select %p172, %s22, 1
          %p174 = scmp.lt.s32.totalorder %s23, 0
          %s175 = scalar_select %p174, %s23, 0
          %s176 = sadd.s32 %s175, %s173
          %s177 = smul.addr %s176, 8
          %s178 = scalar_lea.vmem %s0, %s177
        $region20: #{tpu_custom_call.1} parent=15 // pred_fallthru
          _
        // Predicated region
        $region21: #{tpu_custom_call.1} parent=15 // pred_check
          %p179 = pneg %p84
        $region22: #{tpu_custom_call.1} parent=15 // pred_check_branch
          %181 = sbr.rel (%p179) target = $region24
        $region23: #{tpu_custom_call.1} parent=15 // pred_region
          %p182 = scmp.lt.s32.totalorder %s22, 1
          %s183 = scalar_select %p182, %s22, 1
          %p184 = scmp.lt.s32.totalorder %s24, 0
          %s185 = scalar_select %p184, %s24, 0
          %s186 = sadd.s32 %s185, %s183
          %s187 = smul.addr %s186, 8
          %s188 = scalar_lea.vmem %s1, %s187
        $region24: #{tpu_custom_call.1} parent=15 // pred_fallthru
          _
        // Predicated region
        $region25: #{tpu_custom_call.1} parent=15 // pred_check
          %p189 = pneg %p114
        $region26: #{tpu_custom_call.1} parent=15 // pred_check_branch
          %191 = sbr.rel (%p189) target = $region28
        $region27: #{tpu_custom_call.1} parent=15 // pred_region
          %s192 = sand.u32 %s104, 1
          %s193 = scalar_lea.sflag [#allocation3], %s192
          %s194 = sand.u32 %s104, 1
          %s195 = smul.addr %s194, 8
          %s196 = scalar_lea.vmem [#allocation2], %s195
          %s198 = ssub.s32 128, 128
          %199 = vsyncadd %s193, %s198
          %s200 = sadd.s32 %s24, %s23
          %s201 = sadd.s32 %s200, %s22
          %s202 = smul.addr %s201, 128
          %s203 = scalar_lea.hbm %s2, %s202
          %s205 = sshll.u32 %s196, 4
          %s206 = int_to_ptr.vmem [resolvable:$true] %s205
          %208 = dma.hbm_to_vmem [thread:$0]  %s203, 128, %s206, %s193
        $region28: #{tpu_custom_call.1} parent=15 // pred_fallthru
          _
      $region16: #{tpu_custom_call.1} parent=5 // pred_fallthru
        _
      %p209 = scmp.le.s32.totalorder 1, %s15
      %p210 = scmp.lt.s32.totalorder %s15, 3
      %p211 = pnand %p209, %p210
      %p212 = pneg %p211
      // Predicated region
      $region29: #{tpu_custom_call.1} parent=5 // pred_check
        _
      $region30: #{tpu_custom_call.1} parent=5 // pred_check_branch
        %214 = sbr.rel (%p211) target = $region32
      $region31: #{tpu_custom_call.1} parent=5 // pred_region
        %s215 = ssub.s32 %s15, 1
        %s216 = sand.u32 %s107, 1
        %s217 = scalar_lea.sflag [#allocation3], %s216
        %s218 = sand.u32 %s107, 1
        %s219 = smul.addr %s218, 8
        %s220 = scalar_lea.vmem [#allocation2], %s219
        // Predicated region
        $region33: #{tpu_custom_call.1} parent=31 // pred_check
          %p221 = pneg %p120
        $region34: #{tpu_custom_call.1} parent=31 // pred_check_branch
          %223 = sbr.rel (%p221) target = $region36
        $region35: #{tpu_custom_call.1} parent=31 // pred_region
          %224 = dma.done %s217, 128
        $region36: #{tpu_custom_call.1} parent=31 // pred_fallthru
          _
        %p225 = scmp.lt.s32.totalorder %s25, 1
        %s226 = scalar_select %p225, %s25, 1
        %p227 = scmp.lt.s32.totalorder %s26, 0
        %s228 = scalar_select %p227, %s26, 0
        %s229 = sadd.s32 %s228, %s226
        %s230 = smul.addr %s229, 8
        %s231 = scalar_lea.vmem %s0, %s230
        %p232 = pneg %p62
        %p233 = pneg %p59
        %p234 = scmp.lt.s32.totalorder %s25, 1
        %s235 = scalar_select %p234, %s25, 1
        %p236 = scmp.lt.s32.totalorder %s27, 0
        %s237 = scalar_select %p236, %s27, 0
        %s238 = sadd.s32 %s237, %s235
        %s239 = smul.addr %s238, 8
        %s240 = scalar_lea.vmem %s1, %s239
        %p241 = pneg %p90
        %p242 = pneg %p87
        %s243 = sand.u32 %s107, 1
        %s244 = scalar_lea.sflag [#allocation3], %s243
        %s245 = sand.u32 %s107, 1
        %s246 = smul.addr %s245, 8
        %s247 = scalar_lea.vmem [#allocation2], %s246
        %p248 = pneg %p120
        %p249 = pneg %p117
        %p250 = pneg %p150
        %p251 = pneg %p147
        %s252 = sand.u32 %s137, 1
        %s253 = scalar_lea.sflag [#allocation4], %s252
        %s254 = sand.u32 %s137, 1
        %s255 = smul.addr %s254, 8
        %s256 = scalar_lea.vmem [#allocation5], %s255
        %p257 = scmp.lt.s32.totalorder %s25, 1
        %s258 = scalar_select %p257, %s25, 1
        %p259 = scmp.lt.s32.totalorder %s26, 0
        %s260 = scalar_select %p259, %s26, 0
        %s261 = sadd.s32 %s260, %s258
        %s262 = smul.addr %s261, 8
        %s263 = scalar_lea.vmem %s0, %s262
        %p264 = scmp.lt.s32.totalorder %s25, 1
        %s265 = scalar_select %p264, %s25, 1
        %p266 = scmp.lt.s32.totalorder %s27, 0
        %s267 = scalar_select %p266, %s27, 0
        %s268 = sadd.s32 %s267, %s265
        %s269 = smul.addr %s268, 8
        %s270 = scalar_lea.vmem %s1, %s269
        %v271 = vld [vmem:[%s263] sm:$0xff]
        %v272 = vld [vmem:[%s270] sm:$0x1f]
        %v273 = vmul.f32 %v271, 0.5
        %v274 = vmul.f32 %v272, 0.5
        %v275 = vlaneseq
        %v276 = vshrl.u32 %v275, 7
        %v277 = vsub.s32 0, %v276
        %v278 = vrot.slane %v272, %v277
        %280 = vset.pattern.permute.xlu0 0
        %281 = vperm.xlu0 %280, %v271
        %v282 = vpop.permute.xlu0 %281
        %v284 = vsub.f32 %v278, %v282
        %v285 = vlaneseq
        %v286 = vshrl.u32 %v285, 7
        %v287 = vsub.s32 1, %v286
        %v288 = vrot.slane %v272, %v287
        %289 = vset.pattern.permute.xlu0 1
        %290 = vperm.xlu0 %289, %v271
        %v291 = vpop.permute.xlu0 %290
        %v293 = vsub.f32 %v288, %v291
        %vm294 = vcmp.eq.f32.partialorder %v284, 0.0
        %vm295 = vcmp.eq.f32.partialorder %v293, 0.0
        %vm296 = vmand %vm294, %vm295
        %v297 = vsel %vm296, 1, 0
        %v298 = vcvt.s32.f32 %v297
        %v299 = vmul.f32 %v298, 128.0
        %v300 = vadd.f32 %v284, %v299
        %v301 = vadd.f32 %v293, %v299
        %v302 = vand.u32 2147483647, %v271
        %vm303 = vcmp.le.f32.partialorder %v302, 0.7853982
        %vm304 = vcmp.lt.s32.totalorder %v271, 0
        %v305 = vand.u32 %v271, 2139095040
        %v306 = vshrl.u32 %v305, 23
        %v307 = vsub.s32 %v306, 127
        %v308 = vand.u32 2147483647, %v271
        %v309 = vand.u32 %v308, 8388607
        %v310 = vor.u32 %v309, 8388608
        %v311 = vsub.s32 0, %v310
        %v312 = vadd.s32 %v307, 1
        %vm313 = vcmp.gt.s32.totalorder %v312, 0
        %v314 = vsel %vm313, %v312, 0
        %v315 = vshrl.u32 %v314, 5
        %v316 = vand.u32 %v314, 31
        %v317 = vsub.s32 32, %v316
        %v318 = vshrl.u32 683565275, %v317
        %v319 = vshll.u32 683565275, %v316
        %v320 = vshrl.u32 2475754826, %v317
        %v321 = vor.u32 %v319, %v320
        %v322 = vshll.u32 2475754826, %v316
        %v323 = vshrl.u32 2131351028, %v317
        %v324 = vor.u32 %v322, %v323
        %v325 = vshll.u32 2131351028, %v316
        %v326 = vshrl.u32 2102212464, %v317
        %v327 = vor.u32 %v325, %v326
        %v328 = vshll.u32 2102212464, %v316
        %v329 = vshrl.u32 920167782, %v317
        %v330 = vor.u32 %v328, %v329
        %v331 = vshll.u32 920167782, %v316
        %v332 = vshrl.u32 1326507024, %v317
        %v333 = vor.u32 %v331, %v332
        %vm334 = vcmp.lt.s32.totalorder %v315, 1
        %vm335 = vcmp.lt.s32.totalorder %v315, 2
        %vm336 = vcmp.lt.s32.totalorder %v315, 3
        %vm337 = vcmp.lt.s32.totalorder %v315, 4
        %v338 = vsel %vm334, %v318, %v321
        %v339 = vsel %vm337, %v327, 2102212464
        %v340 = vsel %vm336, %v324, %v339
        %v341 = vsel %vm335, %v338, %v340
        %v342 = vsel %vm334, %v321, %v324
        %v343 = vsel %vm337, %v330, 920167782
        %v344 = vsel %vm336, %v327, %v343
        %v345 = vsel %vm335, %v342, %v344
        %v346 = vsel %vm334, %v324, %v327
        %v347 = vsel %vm337, %v333, 1326507024
        %v348 = vsel %vm336, %v330, %v347
        %v349 = vsel %vm335, %v346, %v348
        %v350 = vshll.u32 %v310, 8
        %v351 = vmul.u32.u64.compose %v350, %v349
        %v352 = vextract.low.u32 %v351
        %v353 = vextract.high.u32 %v351
        %v354 = vmul.u32.u64.compose %v350, %v345
        %v355 = vextract.low.u32 %v354
        %v356 = vextract.high.u32 %v354
        %v357 = vmul.u32 %v350, %v341
        %v358 = vadd.s32 %v353, %v355
        %vm359 = vc.u32 %v353, %v355
        %v360 = vadd.s32 %v356, 1
        %v361 = vsel %vm359, %v360, %v356
        %v362 = vadd.s32 %v357, %v361
        %v363 = vadd.s32 %v362, 536870912
        %v364 = vshrl.u32 %v363, 30
        %v365 = vshll.u32 %v364, 30
        %v366 = vsub.s32 %v362, %v365
        %vm367 = vcmp.lt.s32.totalorder %v366, 0
        %v368 = vsub.s32 0, %v366
        %v369 = vsel %vm367, %v368, %v366
        %v370 = vclz %v369
        %v371 = vsub.s32 %v370, 2
        %vm372 = vcmp.gt.s32.totalorder 0, %v371
        %v373 = vsel %vm372, 0, %v371
        %v374 = vsub.s32 32, %v373
        %v375 = vshll.u32 %v366, %v373
        %v376 = vshrl.u32 %v358, %v374
        %v377 = vor.u32 %v375, %v376
        %v378 = vsub.s32 4294967266, %v373
        %v379 = vadd.s32 %v378, 127
        %v380 = vshll.u32 %v379, 23
        %v381 = vor.u32 4788187, %v380
        %v382 = vand.u32 2147483647, %v381
        %v384 = vcvt.s32.f32 %v377
        %v385 = vmul.f32 %v384, %v382
        %v386 = vxor.u32 %v385, 2147483648
        %v387 = vsel %vm304, %v386, %v385
        %v388 = vsub.s32 4, %v364
        %v389 = vsel %vm304, %v388, %v364
        %v390 = vsel %vm303, %v271, %v387
        %v391 = vsel %vm303, 0, %v389
        %v392 = vcosq.f32.pop %v390
        %v393 = vsinq.f32.pop %v390
        %vm394 = vweird.f32 %v271
        %v395 = vand.u32 %v391, 3
        %vm396 = vcmp.lt.s32.totalorder %v395, 2
        %vm397 = vcmp.eq.s32.totalorder %v395, 0
        %v398 = vxor.u32 %v393, 2147483648
        %v399 = vsel %vm397, %v392, %v398
        %vm400 = vcmp.eq.s32.totalorder %v395, 2
        %v401 = vxor.u32 %v392, 2147483648
        %v402 = vsel %vm400, %v401, %v393
        %v403 = vsel %vm396, %v399, %v402
        %v404 = vsel %vm394, nan, %v403
        %v405 = vand.u32 2147483647, %v271
        %vm406 = vcmp.le.f32.partialorder %v405, 0.7853982
        %vm407 = vcmp.lt.s32.totalorder %v271, 0
        %v408 = vand.u32 %v271, 2139095040
        %v409 = vshrl.u32 %v408, 23
        %v410 = vsub.s32 %v409, 127
        %v411 = vand.u32 2147483647, %v271
        %v412 = vand.u32 %v411, 8388607
        %v413 = vor.u32 %v412, 8388608
        %v414 = vsub.s32 0, %v413
        %v415 = vadd.s32 %v410, 1
        %vm416 = vcmp.gt.s32.totalorder %v415, 0
        %v417 = vsel %vm416, %v415, 0
        %v418 = vshrl.u32 %v417, 5
        %v419 = vand.u32 %v417, 31
        %v420 = vsub.s32 32, %v419
        %v421 = vshrl.u32 683565275, %v420
        %v422 = vshll.u32 683565275, %v419
        %v423 = vshrl.u32 2475754826, %v420
        %v424 = vor.u32 %v422, %v423
        %v425 = vshll.u32 2475754826, %v419
        %v426 = vshrl.u32 2131351028, %v420
        %v427 = vor.u32 %v425, %v426
        %v428 = vshll.u32 2131351028, %v419
        %v429 = vshrl.u32 2102212464, %v420
        %v430 = vor.u32 %v428, %v429
        %v431 = vshll.u32 2102212464, %v419
        %v432 = vshrl.u32 920167782, %v420
        %v433 = vor.u32 %v431, %v432
        %v434 = vshll.u32 920167782, %v419
        %v435 = vshrl.u32 1326507024, %v420
        %v436 = vor.u32 %v434, %v435
        %vm437 = vcmp.lt.s32.totalorder %v418, 1
        %vm438 = vcmp.lt.s32.totalorder %v418, 2
        %vm439 = vcmp.lt.s32.totalorder %v418, 3
        %vm440 = vcmp.lt.s32.totalorder %v418, 4
        %v441 = vsel %vm437, %v421, %v424
        %v442 = vsel %vm440, %v430, 2102212464
        %v443 = vsel %vm439, %v427, %v442
        %v444 = vsel %vm438, %v441, %v443
        %v445 = vsel %vm437, %v424, %v427
        %v446 = vsel %vm440, %v433, 920167782
        %v447 = vsel %vm439, %v430, %v446
        %v448 = vsel %vm438, %v445, %v447
        %v449 = vsel %vm437, %v427, %v430
        %v450 = vsel %vm440, %v436, 1326507024
        %v451 = vsel %vm439, %v433, %v450
        %v452 = vsel %vm438, %v449, %v451
        %v453 = vshll.u32 %v413, 8
        %v454 = vmul.u32.u64.compose %v453, %v452
        %v455 = vextract.low.u32 %v454
        %v456 = vextract.high.u32 %v454
        %v457 = vmul.u32.u64.compose %v453, %v448
        %v458 = vextract.low.u32 %v457
        %v459 = vextract.high.u32 %v457
        %v460 = vmul.u32 %v453, %v444
        %v461 = vadd.s32 %v456, %v458
        %vm462 = vc.u32 %v456, %v458
        %v463 = vadd.s32 %v459, 1
        %v464 = vsel %vm462, %v463, %v459
        %v465 = vadd.s32 %v460, %v464
        %v466 = vadd.s32 %v465, 536870912
        %v467 = vshrl.u32 %v466, 30
        %v468 = vshll.u32 %v467, 30
        %v469 = vsub.s32 %v465, %v468
        %vm470 = vcmp.lt.s32.totalorder %v469, 0
        %v471 = vsub.s32 0, %v469
        %v472 = vsel %vm470, %v471, %v469
        %v473 = vclz %v472
        %v474 = vsub.s32 %v473, 2
        %vm475 = vcmp.gt.s32.totalorder 0, %v474
        %v476 = vsel %vm475, 0, %v474
        %v477 = vsub.s32 32, %v476
        %v478 = vshll.u32 %v469, %v476
        %v479 = vshrl.u32 %v461, %v477
        %v480 = vor.u32 %v478, %v479
        %v481 = vsub.s32 4294967266, %v476
        %v482 = vadd.s32 %v481, 127
        %v483 = vshll.u32 %v482, 23
        %v484 = vor.u32 4788187, %v483
        %v485 = vand.u32 2147483647, %v484
        %v487 = vcvt.s32.f32 %v480
        %v488 = vmul.f32 %v487, %v485
        %v489 = vxor.u32 %v488, 2147483648
        %v490 = vsel %vm407, %v489, %v488
        %v491 = vsub.s32 4, %v467
        %v492 = vsel %vm407, %v491, %v467
        %v493 = vsel %vm406, %v271, %v490
        %v494 = vsel %vm406, 0, %v492
        %v495 = vcosq.f32.pop %v493
        %v496 = vsinq.f32.pop %v493
        %vm497 = vweird.f32 %v271
        %v498 = vadd.s32 %v494, 3
        %v499 = vand.u32 %v498, 3
        %vm500 = vcmp.lt.s32.totalorder %v499, 2
        %vm501 = vcmp.eq.s32.totalorder %v499, 0
        %v502 = vxor.u32 %v496, 2147483648
        %v503 = vsel %vm501, %v495, %v502
        %vm504 = vcmp.eq.s32.totalorder %v499, 2
        %v505 = vxor.u32 %v495, 2147483648
        %v506 = vsel %vm504, %v505, %v496
        %v507 = vsel %vm500, %v503, %v506
        %v508 = vsel %vm497, nan, %v507
        %v509 = vmul.f32 %v273, %v273
        %511 = vrot.lane.b32.xlu0 %v273, 1
        %v512 = vpop.permute.xlu0 %511
        %v514 = vmul.f32 %v273, %v512
        %v515 = vand.u32 2147483647, %v272
        %vm516 = vcmp.le.f32.partialorder %v515, 0.7853982
        %vm517 = vcmp.lt.s32.totalorder %v272, 0
        %v518 = vand.u32 %v272, 2139095040
        %v519 = vshrl.u32 %v518, 23
        %v520 = vsub.s32 %v519, 127
        %v521 = vand.u32 2147483647, %v272
        %v522 = vand.u32 %v521, 8388607
        %v523 = vor.u32 %v522, 8388608
        %v524 = vsub.s32 0, %v523
        %v525 = vadd.s32 %v520, 1
        %vm526 = vcmp.gt.s32.totalorder %v525, 0
        %v527 = vsel %vm526, %v525, 0
        %v528 = vshrl.u32 %v527, 5
        %v529 = vand.u32 %v527, 31
        %v530 = vsub.s32 32, %v529
        %v531 = vshrl.u32 683565275, %v530
        %v532 = vshll.u32 683565275, %v529
        %v533 = vshrl.u32 2475754826, %v530
        %v534 = vor.u32 %v532, %v533
        %v535 = vshll.u32 2475754826, %v529
        %v536 = vshrl.u32 2131351028, %v530
        %v537 = vor.u32 %v535, %v536
        %v538 = vshll.u32 2131351028, %v529
        %v539 = vshrl.u32 2102212464, %v530
        %v540 = vor.u32 %v538, %v539
        %v541 = vshll.u32 2102212464, %v529
        %v542 = vshrl.u32 920167782, %v530
        %v543 = vor.u32 %v541, %v542
        %v544 = vshll.u32 920167782, %v529
        %v545 = vshrl.u32 1326507024, %v530
        %v546 = vor.u32 %v544, %v545
        %vm547 = vcmp.lt.s32.totalorder %v528, 1
        %vm548 = vcmp.lt.s32.totalorder %v528, 2
        %vm549 = vcmp.lt.s32.totalorder %v528, 3
        %vm550 = vcmp.lt.s32.totalorder %v528, 4
        %v551 = vsel %vm547, %v531, %v534
        %v552 = vsel %vm550, %v540, 2102212464
        %v553 = vsel %vm549, %v537, %v552
        %v554 = vsel %vm548, %v551, %v553
        %v555 = vsel %vm547, %v534, %v537
        %v556 = vsel %vm550, %v543, 920167782
        %v557 = vsel %vm549, %v540, %v556
        %v558 = vsel %vm548, %v555, %v557
        %v559 = vsel %vm547, %v537, %v540
        %v560 = vsel %vm550, %v546, 1326507024
        %v561 = vsel %vm549, %v543, %v560
        %v562 = vsel %vm548, %v559, %v561
        %v563 = vshll.u32 %v523, 8
        %v564 = vmul.u32.u64.compose %v563, %v562
        %v565 = vextract.low.u32 %v564
        %v566 = vextract.high.u32 %v564
        %v567 = vmul.u32.u64.compose %v563, %v558
        %v568 = vextract.low.u32 %v567
        %v569 = vextract.high.u32 %v567
        %v570 = vmul.u32 %v563, %v554
        %v571 = vadd.s32 %v566, %v568
        %vm572 = vc.u32 %v566, %v568
        %v573 = vadd.s32 %v569, 1
        %v574 = vsel %vm572, %v573, %v569
        %v575 = vadd.s32 %v570, %v574
        %v576 = vadd.s32 %v575, 536870912
        %v577 = vshrl.u32 %v576, 30
        %v578 = vshll.u32 %v577, 30
        %v579 = vsub.s32 %v575, %v578
        %vm580 = vcmp.lt.s32.totalorder %v579, 0
        %v581 = vsub.s32 0, %v579
        %v582 = vsel %vm580, %v581, %v579
        %v583 = vclz %v582
        %v584 = vsub.s32 %v583, 2
        %vm585 = vcmp.gt.s32.totalorder 0, %v584
        %v586 = vsel %vm585, 0, %v584
        %v587 = vsub.s32 32, %v586
        %v588 = vshll.u32 %v579, %v586
        %v589 = vshrl.u32 %v571, %v587
        %v590 = vor.u32 %v588, %v589
        %v591 = vsub.s32 4294967266, %v586
        %v592 = vadd.s32 %v591, 127
        %v593 = vshll.u32 %v592, 23
        %v594 = vor.u32 4788187, %v593
        %v595 = vand.u32 2147483647, %v594
        %v597 = vcvt.s32.f32 %v590
        %v598 = vmul.f32 %v597, %v595
        %v599 = vxor.u32 %v598, 2147483648
        %v600 = vsel %vm517, %v599, %v598
        %v601 = vsub.s32 4, %v577
        %v602 = vsel %vm517, %v601, %v577
        %v603 = vsel %vm516, %v272, %v600
        %v604 = vsel %vm516, 0, %v602
        %v605 = vcosq.f32.pop %v603
        %v606 = vsinq.f32.pop %v603
        %vm607 = vweird.f32 %v272
        %v608 = vand.u32 %v604, 3
        %vm609 = vcmp.lt.s32.totalorder %v608, 2
        %vm610 = vcmp.eq.s32.totalorder %v608, 0
        %v611 = vxor.u32 %v606, 2147483648
        %v612 = vsel %vm610, %v605, %v611
        %vm613 = vcmp.eq.s32.totalorder %v608, 2
        %v614 = vxor.u32 %v605, 2147483648
        %v615 = vsel %vm613, %v614, %v606
        %v616 = vsel %vm609, %v612, %v615
        %v617 = vsel %vm607, nan, %v616
        %v618 = vand.u32 2147483647, %v272
        %vm619 = vcmp.le.f32.partialorder %v618, 0.7853982
        %vm620 = vcmp.lt.s32.totalorder %v272, 0
        %v621 = vand.u32 %v272, 2139095040
        %v622 = vshrl.u32 %v621, 23
        %v623 = vsub.s32 %v622, 127
        %v624 = vand.u32 2147483647, %v272
        %v625 = vand.u32 %v624, 8388607
        %v626 = vor.u32 %v625, 8388608
        %v627 = vsub.s32 0, %v626
        %v628 = vadd.s32 %v623, 1
        %vm629 = vcmp.gt.s32.totalorder %v628, 0
        %v630 = vsel %vm629, %v628, 0
        %v631 = vshrl.u32 %v630, 5
        %v632 = vand.u32 %v630, 31
        %v633 = vsub.s32 32, %v632
        %v634 = vshrl.u32 683565275, %v633
        %v635 = vshll.u32 683565275, %v632
        %v636 = vshrl.u32 2475754826, %v633
        %v637 = vor.u32 %v635, %v636
        %v638 = vshll.u32 2475754826, %v632
        %v639 = vshrl.u32 2131351028, %v633
        %v640 = vor.u32 %v638, %v639
        %v641 = vshll.u32 2131351028, %v632
        %v642 = vshrl.u32 2102212464, %v633
        %v643 = vor.u32 %v641, %v642
        %v644 = vshll.u32 2102212464, %v632
        %v645 = vshrl.u32 920167782, %v633
        %v646 = vor.u32 %v644, %v645
        %v647 = vshll.u32 920167782, %v632
        %v648 = vshrl.u32 1326507024, %v633
        %v649 = vor.u32 %v647, %v648
        %vm650 = vcmp.lt.s32.totalorder %v631, 1
        %vm651 = vcmp.lt.s32.totalorder %v631, 2
        %vm652 = vcmp.lt.s32.totalorder %v631, 3
        %vm653 = vcmp.lt.s32.totalorder %v631, 4
        %v654 = vsel %vm650, %v634, %v637
        %v655 = vsel %vm653, %v643, 2102212464
        %v656 = vsel %vm652, %v640, %v655
        %v657 = vsel %vm651, %v654, %v656
        %v658 = vsel %vm650, %v637, %v640
        %v659 = vsel %vm653, %v646, 920167782
        %v660 = vsel %vm652, %v643, %v659
        %v661 = vsel %vm651, %v658, %v660
        %v662 = vsel %vm650, %v640, %v643
        %v663 = vsel %vm653, %v649, 1326507024
        %v664 = vsel %vm652, %v646, %v663
        %v665 = vsel %vm651, %v662, %v664
        %v666 = vshll.u32 %v626, 8
        %v667 = vmul.u32.u64.compose %v666, %v665
        %v668 = vextract.low.u32 %v667
        %v669 = vextract.high.u32 %v667
        %v670 = vmul.u32.u64.compose %v666, %v661
        %v671 = vextract.low.u32 %v670
        %v672 = vextract.high.u32 %v670
        %v673 = vmul.u32 %v666, %v657
        %v674 = vadd.s32 %v669, %v671
        %vm675 = vc.u32 %v669, %v671
        %v676 = vadd.s32 %v672, 1
        %v677 = vsel %vm675, %v676, %v672
        %v678 = vadd.s32 %v673, %v677
        %v679 = vadd.s32 %v678, 536870912
        %v680 = vshrl.u32 %v679, 30
        %v681 = vshll.u32 %v680, 30
        %v682 = vsub.s32 %v678, %v681
        %vm683 = vcmp.lt.s32.totalorder %v682, 0
        %v684 = vsub.s32 0, %v682
        %v685 = vsel %vm683, %v684, %v682
        %v686 = vclz %v685
        %v687 = vsub.s32 %v686, 2
        %vm688 = vcmp.gt.s32.totalorder 0, %v687
        %v689 = vsel %vm688, 0, %v687
        %v690 = vsub.s32 32, %v689
        %v691 = vshll.u32 %v682, %v689
        %v692 = vshrl.u32 %v674, %v690
        %v693 = vor.u32 %v691, %v692
        %v694 = vsub.s32 4294967266, %v689
        %v695 = vadd.s32 %v694, 127
        %v696 = vshll.u32 %v695, 23
        %v697 = vor.u32 4788187, %v696
        %v698 = vand.u32 2147483647, %v697
        %v700 = vcvt.s32.f32 %v693
        %v701 = vmul.f32 %v700, %v698
        %v702 = vxor.u32 %v701, 2147483648
        %v703 = vsel %vm620, %v702, %v701
        %v704 = vsub.s32 4, %v680
        %v705 = vsel %vm620, %v704, %v680
        %v706 = vsel %vm619, %v272, %v703
        %v707 = vsel %vm619, 0, %v705
        %v708 = vcosq.f32.pop %v706
        %v709 = vsinq.f32.pop %v706
        %vm710 = vweird.f32 %v272
        %v711 = vadd.s32 %v707, 3
        %v712 = vand.u32 %v711, 3
        %vm713 = vcmp.lt.s32.totalorder %v712, 2
        %vm714 = vcmp.eq.s32.totalorder %v712, 0
        %v715 = vxor.u32 %v709, 2147483648
        %v716 = vsel %vm714, %v708, %v715
        %vm717 = vcmp.eq.s32.totalorder %v712, 2
        %v718 = vxor.u32 %v708, 2147483648
        %v719 = vsel %vm717, %v718, %v709
        %v720 = vsel %vm713, %v716, %v719
        %v721 = vsel %vm710, nan, %v720
        %v722 = vmul.f32 %v274, %v274
        %v724 = vrot.slane %v274, 7
        %v726 = vmul.f32 %v274, %v724
        %v727 = vmul.f32 %v300, %v300
        %v728 = vmul.f32 %v301, %v301
        %v729 = vadd.f32 %v727, %v728
        %v730 = vrsqrt.pop %v729
        %v731 = vmul.f32 %v300, %v730
        %v732 = vmul.f32 %v301, %v730
        %v733 = vlaneseq
        %v734 = vshrl.u32 %v733, 7
        %v735 = vsub.s32 4, %v734
        %v736 = vrot.slane %v617, %v735
        %v737 = vmul.f32 %v736, %v731
        %v738 = vlaneseq
        %v739 = vshrl.u32 %v738, 7
        %v740 = vsub.s32 4, %v739
        %v741 = vrot.slane %v721, %v740
        %v742 = vmul.f32 %v741, %v732
        %v743 = vadd.f32 %v737, %v742
        %v744 = vmul.f32 %v741, %v731
        %v745 = vmul.f32 %v736, %v732
        %v746 = vsub.f32 %v744, %v745
        %748 = vset.pattern.permute.xlu0 4
        %749 = vperm.xlu0 %748, %v404
        %v750 = vpop.permute.xlu0 %749
        %v752 = vmul.f32 %v750, %v731
        %754 = vset.pattern.permute.xlu0 4
        %755 = vperm.xlu0 %754, %v508
        %v756 = vpop.permute.xlu0 %755
        %v758 = vmul.f32 %v756, %v732
        %v759 = vadd.f32 %v752, %v758
        %v760 = vmul.f32 %v756, %v731
        %v761 = vmul.f32 %v750, %v732
        %v762 = vsub.f32 %v760, %v761
        %v763 = vmul.f32 %v743, %v743
        %v764 = vlaneseq
        %v765 = vshrl.u32 %v764, 7
        %v766 = vsub.s32 3, %v765
        %v767 = vrot.slane %v722, %v766
        %v768 = vmul.f32 %v763, %v767
        %v769 = vmul.f32 %v746, %v746
        %v770 = vlaneseq
        %v771 = vshrl.u32 %v770, 7
        %v772 = vsub.s32 2, %v771
        %v773 = vrot.slane %v722, %v772
        %v774 = vmul.f32 %v769, %v773
        %v775 = vadd.f32 %v768, %v774
        %v776 = vrsqrt.pop %v775
        %v777 = vmul.f32 %v775, %v776
        %vm778 = vcmp.eq.f32.partialorder %v775, inf
        %v779 = vsel %vm778, %v775, %v777
        %vm780 = vcmp.eq.f32.partialorder %v775, 0.0
        %v781 = vand.u32 %v775, 2147483648
        %v782 = vsel %vm780, %v781, %v779
        %v783 = vadd.f32 %v782, 1e-05
        %v784 = vmul.f32 %v759, %v759
        %786 = vset.pattern.permute.xlu0 3
        %787 = vperm.xlu0 %786, %v509
        %v788 = vpop.permute.xlu0 %787
        %v790 = vmul.f32 %v784, %v788
        %v791 = vmul.f32 %v762, %v762
        %792 = vset.pattern.permute.xlu0 2
        %793 = vperm.xlu0 %792, %v509
        %v794 = vpop.permute.xlu0 %793
        %v796 = vmul.f32 %v791, %v794
        %v797 = vadd.f32 %v790, %v796
        %v798 = vrsqrt.pop %v797
        %v799 = vmul.f32 %v797, %v798
        %vm800 = vcmp.eq.f32.partialorder %v797, inf
        %v801 = vsel %vm800, %v797, %v799
        %vm802 = vcmp.eq.f32.partialorder %v797, 0.0
        %v803 = vand.u32 %v797, 2147483648
        %v804 = vsel %vm802, %v803, %v801
        %v805 = vadd.f32 %v804, 1e-05
        %v806 = vrcp.pop %v783
        %v807 = vlaneseq
        %v808 = vshrl.u32 %v807, 7
        %v809 = vsub.s32 3, %v808
        %v810 = vrot.slane %v726, %v809
        %v811 = vmul.f32 %v810, %v806
        %v812 = vrcp.pop %v805
        %814 = vset.pattern.permute.xlu0 3
        %815 = vperm.xlu0 %814, %v514
        %v816 = vpop.permute.xlu0 %815
        %v818 = vmul.f32 %v816, %v812
        %v819 = vmax.f32 %v811, 1e-05
        %v820 = vmax.f32 %v818, 1e-05
        %v821 = vld [vmem:[%s220] sm:$0xff]
        %v822 = vsub.f32 %v821, %v819
        %v823 = vsub.f32 %v822, %v820
        %vm824 = vcmask 130048
        %825 = vst.msk [vmem:[%s256] sm:$0xff] %vm824, %v823
        %s826 = sand.u32 %s137, 1
        %s827 = scalar_lea.sflag [#allocation4], %s826
        %s828 = sand.u32 %s137, 1
        %s829 = smul.addr %s828, 8
        %s830 = scalar_lea.vmem [#allocation5], %s829
        // Predicated region
        $region37: #{tpu_custom_call.1} parent=31 // pred_check
          %p831 = pneg %p147
        $region38: #{tpu_custom_call.1} parent=31 // pred_check_branch
          %833 = sbr.rel (%p831) target = $region40
        $region39: #{tpu_custom_call.1} parent=31 // pred_region
          %s835 = ssub.s32 128, 128
          %836 = vsyncadd %s827, %s835
          %s837 = sadd.s32 %s27, %s26
          %s838 = sadd.s32 %s837, %s25
          %s839 = smul.addr %s838, 128
          %s840 = scalar_lea.hbm %s3, %s839
          %s842 = sshll.u32 %s830, 4
          %s843 = int_to_ptr.vmem [resolvable:$true] %s842
          %845 = dma.vmem_to_hbm [thread:$0]  %s843, 128, %s840, %s827
        $region40: #{tpu_custom_call.1} parent=31 // pred_fallthru
          _
      $region32: #{tpu_custom_call.1} parent=5 // pred_fallthru
        _
      %p846 = scmp.le.s32.totalorder 2, %s15
      // Predicated region
      $region41: #{tpu_custom_call.1} parent=5 // pred_check
        %p847 = pneg %p846
      $region42: #{tpu_custom_call.1} parent=5 // pred_check_branch
        %849 = sbr.rel (%p847) target = $region44
      $region43: #{tpu_custom_call.1} parent=5 // pred_region
        %s850 = ssub.s32 %s15, 2
        // Predicated region
        $region45: #{tpu_custom_call.1} parent=43 // pred_check
          %p851 = pneg %p153
        $region46: #{tpu_custom_call.1} parent=43 // pred_check_branch
          %853 = sbr.rel (%p851) target = $region48
        $region47: #{tpu_custom_call.1} parent=43 // pred_region
          %s854 = sand.u32 %s138, 1
          %s855 = scalar_lea.sflag [#allocation4], %s854
          %s856 = sand.u32 %s138, 1
          %s857 = smul.addr %s856, 8
          %s858 = scalar_lea.vmem [#allocation5], %s857
          %859 = dma.done %s855, 128
        $region48: #{tpu_custom_call.1} parent=43 // pred_fallthru
          _
      $region44: #{tpu_custom_call.1} parent=5 // pred_fallthru
        _
    $region6: #{tpu_custom_call.1} parent=1 // loop_footer
      %s19 = sadd.s32 1, %s15
    $region7: #{tpu_custom_call.1} parent=1 // loop_footer_branch
      %14 = sbr.rel target = $region3
    $region8: #{tpu_custom_call.1} parent=1 // loop_exit
      _
    %860 = vsyncpa [#allocation3], 1
    %s861 = scalar_lea.sflag [#allocation3], 1
    %862 = vsyncpa %s861, 1
    %863 = vsyncpa [#allocation4], 1
    %s864 = scalar_lea.sflag [#allocation4], 1
    %865 = vsyncpa %s864, 1

</llo_original>
